<compile_context>
chip_gen: v7x
topology: tpu7x:2x2x1
jax: 0.10.0
libtpu: 0.0.40
codegen_flags: <defaults>
</compile_context>

<pallas_src>
import jax
import jax.numpy as jnp
from jax.experimental import pallas as pl
from jax.experimental.pallas import tpu as pltpu

_LANE = 128
_SUBLANE = 8


def _round_up(n, m):
    return ((n + m - 1) // m) * m


def _default_act_dtype():
    """bf16 transcendentals on v6e/v7x (bf16 EUP); f32 elsewhere (v5e and older)."""
    try:
        kind = jax.devices()[0].device_kind.lower()
    except Exception:
        return jnp.float32
    if any(tag in kind for tag in ("v6", "v7", "7x")):
        return jnp.bfloat16
    return jnp.float32


def _make_kernel(act_dtype, n_split):
    """Build the fused 4-stage forward kernel.

    act_dtype : dtype of the tanh/sigmoid path (bf16 on v6e/v7x feeds the MXU
                directly with no extra cast; f32 on v5e).
    n_split   : number of independent row sub-blocks per batch tile, so the
                scheduler can overlap EUP sigmoids with MXU matmuls.
    """

    def sigmoid(x):
        # sigmoid(x) == 0.5 * tanh(0.5 * x) + 0.5 -> one EUP op per element.
        x = x.astype(act_dtype)
        return 0.5 * jnp.tanh(0.5 * x) + 0.5

    def block_forward(state, w_in, b_in, w_ca3, b_ca3, w_out, b_out):
        mm_dtype = w_ca3.dtype
        num_f = w_in.shape[0]                  # static (== numContext + 2)

        # Stage 1 (input_to_autoencoder).
        if num_f < 16:
            # Tiny contraction depth: F VPU multiply-adds (outer-product style)
            # beat a >90%-padded MXU pass.
            acc = state[:, 0:1] * w_in[0:1, :]
            for f in range(1, num_f):
                acc = acc + state[:, f:f + 1] * w_in[f:f + 1, :]
        else:
            acc = jnp.dot(state.astype(mm_dtype), w_in.astype(mm_dtype),
                          preferred_element_type=jnp.float32)
        x = sigmoid(acc + b_in).astype(mm_dtype)

        # Stages 2+3 (AutoEncoder): the SAME weight applied twice.
        s1 = sigmoid(jnp.dot(x, w_ca3, preferred_element_type=jnp.float32)
                     + b_ca3).astype(mm_dtype)
        ca3 = sigmoid(jnp.dot(s1, w_ca3, preferred_element_type=jnp.float32)
                      + b_ca3).astype(mm_dtype)

        # Stage 4 (autoencoder_to_linear).
        return sigmoid(jnp.dot(ca3, w_out, preferred_element_type=jnp.float32)
                       + b_out)

    def kernel(state_ref, w_in_ref, b_in_ref, w_ca3_ref, b_ca3_ref,
               w_out_ref, b_out_ref, out_ref):
        w_in = w_in_ref[...]                   # (F, UP)  f32 (VPU path)
        b_in = b_in_ref[...]                   # (1, UP)  f32
        w_ca3 = w_ca3_ref[...]                 # (UP, UP) matmul dtype (shared CA3W)
        b_ca3 = b_ca3_ref[...]
        w_out = w_out_ref[...]
        b_out = b_out_ref[...]

        tb = state_ref.shape[0]
        sub = tb // n_split
        # Independent sub-blocks traced in one basic block: the LLO scheduler
        # interleaves sub-block A's EUP sigmoid with sub-block B's MXU matmul.
        outs = []
        for s in range(n_split):
            outs.append(block_forward(state_ref[s * sub:(s + 1) * sub, :],
                                      w_in, b_in, w_ca3, b_ca3, w_out, b_out))
        for s in range(n_split):
            out_ref[s * sub:(s + 1) * sub, :] = outs[s].astype(out_ref.dtype)

    return kernel


def pack_params(params, *, matmul_dtype=jnp.bfloat16):
    """Pad the unit dim to a lane-dense multiple of 128 and pre-cast MXU weights.

    Zero padding is semantics preserving: padded weight ROWS are zero, so values
    in padded activation lanes (sigmoid(0)=0.5) never contribute to valid lanes;
    padded output lanes are sliced away by the caller.
    """
    units = params["w_in"].shape[1]
    up = _round_up(units, _LANE)
    pad = up - units

    pad_cols = lambda a: jnp.pad(a, ((0, 0), (0, pad)))
    pad_sq = lambda a: jnp.pad(a, ((0, pad), (0, pad)))

    return dict(
        w_in=pad_cols(params["w_in"]).astype(jnp.float32),    # stays f32 (VPU path)
        b_in=pad_cols(params["b_in"]).astype(jnp.float32),
        w_ca3=pad_sq(params["w_ca3"]).astype(matmul_dtype),
        b_ca3=pad_cols(params["b_ca3"]).astype(jnp.float32),
        w_out=pad_sq(params["w_out"]).astype(matmul_dtype),
        b_out=pad_cols(params["b_out"]).astype(jnp.float32),
    )


def _choose_tiling(B, *, max_tile=1024, align=16):
    """Adaptive (tile_b, padded_B): small batches stay small (sublane-aligned),
    large batches use 512-1024-row tiles to amortize per-grid-step overhead."""
    B = max(int(B), 1)
    if B <= _SUBLANE:
        return _SUBLANE, _SUBLANE
    n_steps = -(-B // max_tile)
    if B >= 512:
        n_steps = max(n_steps, 2)       # give a v7x megacore >=2 tiles to shard
    tile_b = _round_up(-(-B // n_steps), align)
    return tile_b, tile_b * n_steps


def episodic_learner_forward(state, packed, units, *, out_dtype=jnp.bfloat16,
                             act_dtype=None):
    """state: (B, F) f32.  packed: output of pack_params.  Returns (B, units)."""
    B, F = state.shape
    UP = packed["w_ca3"].shape[0]
    tile_b, BP = _choose_tiling(B)
    state_p = state if BP == B else jnp.pad(state, ((0, BP - B), (0, 0)))

    if act_dtype is None:
        act_dtype = _default_act_dtype()
    n_split = 2 if (tile_b >= 16 and tile_b % 16 == 0) else 1
    kernel = _make_kernel(act_dtype, n_split)

    # Resident blocks (constant index_map): DMA'd once, live in VMEM across the grid.
    # TODO(synk): if `units` is ever scaled up (>= ~1k) add pipeline_mode=pl.Buffered(1)
    # here so resident weights are not double-buffered (matters for v7x's 64 MiB VMEM).
    const = lambda shape: pl.BlockSpec(shape, lambda i: (0, 0))

    out_p = pl.pallas_call(
        kernel,
        out_shape=jax.ShapeDtypeStruct((BP, UP), out_dtype),
        grid=(BP // tile_b,),
        in_specs=[
            pl.BlockSpec((tile_b, F), lambda i: (i, 0)),   # streamed activations
            const((F, UP)), const((1, UP)),                # weights/biases: DMA once
            const((UP, UP)), const((1, UP)),
            const((UP, UP)), const((1, UP)),
        ],
        out_specs=pl.BlockSpec((tile_b, UP), lambda i: (i, 0)),
        compiler_params=pltpu.CompilerParams(
            dimension_semantics=("parallel",)),            # v7x: shard tiles over 2 TCs
    )(state_p,
      packed["w_in"], packed["b_in"],
      packed["w_ca3"], packed["b_ca3"],
      packed["w_out"], packed["b_out"])

    # TODO(synk): for maximal large-batch throughput, pack 128/units rows into one
    # lane-dense 128-lane row before the store (4x fewer output bytes at units=32)
    # instead of slicing the lane-padded block here.
    return out_p[:B, :units]


def init_params(key, num_context, units):
    """nn.Linear-style init (uniform +/- 1/sqrt(fan_in)); weights stored (in, out)."""
    F = num_context + 2
    ks = jax.random.split(key, 6)

    def lin(kw, kb, fan_in, fan_out):
        bound = 1.0 / jnp.sqrt(fan_in)
        w = jax.random.uniform(kw, (fan_in, fan_out), jnp.float32, -bound, bound)
        b = jax.random.uniform(kb, (1, fan_out), jnp.float32, -bound, bound)
        return w, b

    w_in, b_in = lin(ks[0], ks[1], F, units)        # input_to_autoencoder
    w_ca3, b_ca3 = lin(ks[2], ks[3], units, units)  # AutoEncoder.CA3W (shared)
    w_out, b_out = lin(ks[4], ks[5], units, units)  # autoencoder_to_linear
    return dict(w_in=w_in, b_in=b_in,
                w_ca3=w_ca3, b_ca3=b_ca3,
                w_out=w_out, b_out=b_out)


def reference_forward(state, p):
    """Pure-JAX f32 reference of the same forward pass."""
    x = jax.nn.sigmoid(state @ p["w_in"] + p["b_in"])
    s1 = jax.nn.sigmoid(x @ p["w_ca3"] + p["b_ca3"])
    ca3 = jax.nn.sigmoid(s1 @ p["w_ca3"] + p["b_ca3"])
    return jax.nn.sigmoid(ca3 @ p["w_out"] + p["b_out"])


if __name__ == "__main__":
    num_context = 0          # module default -> F = 2 input features
    units = 32               # CA3Units == CA1Units

    key = jax.random.PRNGKey(0)
    k1, k2, k3, kp = jax.random.split(key, 4)

    params = init_params(kp, num_context, units)
    packed = pack_params(params, matmul_dtype=jnp.bfloat16)

    def check(state, atol=3e-2):
        out = jax.block_until_ready(
            episodic_learner_forward(state, packed, units))
        ref = reference_forward(state, params)
        assert out.shape == ref.shape, (out.shape, ref.shape)
        err = jnp.max(jnp.abs(out.astype(jnp.float32) - ref))
        # bf16 matmul weights + bf16 activations/output -> looser tolerance than f32.
        assert jnp.allclose(out.astype(jnp.float32), ref, atol=atol, rtol=0.0), float(err)

    # Small batch (typical single-step usage): one tiny 8-row tile, no 128-row padding.
    check(jax.random.uniform(k1, (8, num_context + 2), jnp.float32))
    # Medium batch: single large-ish adaptive tile, padding + resident weights.
    check(jax.random.uniform(k2, (300, num_context + 2), jnp.float32))
    # Large batch: multiple grid steps, sub-block MXU/EUP overlap, bf16 output writes.
    check(jax.random.uniform(k3, (2600, num_context + 2), jnp.float32))

    # TODO(synk): training-time methods (backward, SGD optimizers, Critic TD
    # updates, probeCA1 place-field probe) involve autograd / host-side scalar
    # state and are out of scope for this forward kernel.
    print("KERNEL_OK")
</pallas_src>

<mosaic_0001>
module attributes {stable_mosaic.version = 11 : i64} {
  func.func @kernel(%arg0: i32, %arg1: memref<8x2xf32, #tpu.memory_space<vmem>>, %arg2: memref<2x128xf32, #tpu.memory_space<vmem>>, %arg3: memref<1x128xf32, #tpu.memory_space<vmem>>, %arg4: memref<128x128xbf16, #tpu.memory_space<vmem>>, %arg5: memref<1x128xf32, #tpu.memory_space<vmem>>, %arg6: memref<128x128xbf16, #tpu.memory_space<vmem>>, %arg7: memref<1x128xf32, #tpu.memory_space<vmem>>, %arg8: memref<8x128xbf16, #tpu.memory_space<vmem>>) attributes {dimension_semantics = [#tpu.dimension_semantics<parallel>], iteration_bounds = array<i64: 1>, scalar_prefetch = 0 : i64, scratch_operands = 0 : i64, tpu.core_type = #tpu.core_type<tc>, window_params = [{transform_indices = @transform_0, window_bounds = array<i64: 8, 2>}, {pipeline_mode = #tpu.pipeline_mode<synchronous>, transform_indices = @transform_1, window_bounds = array<i64: 2, 128>}, {pipeline_mode = #tpu.pipeline_mode<synchronous>, transform_indices = @transform_2, window_bounds = array<i64: 1, 128>}, {pipeline_mode = #tpu.pipeline_mode<synchronous>, transform_indices = @transform_3, window_bounds = array<i64: 128, 128>}, {pipeline_mode = #tpu.pipeline_mode<synchronous>, transform_indices = @transform_4, window_bounds = array<i64: 1, 128>}, {pipeline_mode = #tpu.pipeline_mode<synchronous>, transform_indices = @transform_5, window_bounds = array<i64: 128, 128>}, {pipeline_mode = #tpu.pipeline_mode<synchronous>, transform_indices = @transform_6, window_bounds = array<i64: 1, 128>}, {transform_indices = @transform_7, window_bounds = array<i64: 8, 128>}]} {
    %c0 = arith.constant 0 : index
    %c0_0 = arith.constant 0 : index
    %0 = vector.load %arg2[%c0, %c0_0] : memref<2x128xf32, #tpu.memory_space<vmem>>, vector<2x128xf32>
    %c0_1 = arith.constant 0 : index
    %c0_2 = arith.constant 0 : index
    %1 = vector.load %arg3[%c0_1, %c0_2] : memref<1x128xf32, #tpu.memory_space<vmem>>, vector<1x128xf32>
    %c0_3 = arith.constant 0 : index
    %c0_4 = arith.constant 0 : index
    %2 = vector.load %arg4[%c0_3, %c0_4] : memref<128x128xbf16, #tpu.memory_space<vmem>>, vector<128x128xbf16>
    %c0_5 = arith.constant 0 : index
    %c0_6 = arith.constant 0 : index
    %3 = vector.load %arg5[%c0_5, %c0_6] : memref<1x128xf32, #tpu.memory_space<vmem>>, vector<1x128xf32>
    %c0_7 = arith.constant 0 : index
    %c0_8 = arith.constant 0 : index
    %4 = vector.load %arg6[%c0_7, %c0_8] : memref<128x128xbf16, #tpu.memory_space<vmem>>, vector<128x128xbf16>
    %c0_9 = arith.constant 0 : index
    %c0_10 = arith.constant 0 : index
    %5 = vector.load %arg7[%c0_9, %c0_10] : memref<1x128xf32, #tpu.memory_space<vmem>>, vector<1x128xf32>
    %c0_11 = arith.constant 0 : index
    %c0_12 = arith.constant 0 : index
    %6 = vector.load %arg1[%c0_11, %c0_12] : memref<8x2xf32, #tpu.memory_space<vmem>>, vector<8x2xf32>
    %7 = vector.extract_strided_slice %6 {offsets = [0, 0], sizes = [8, 1], strides = [1, 1]} : vector<8x2xf32> to vector<8x1xf32>
    %8 = vector.extract_strided_slice %0 {offsets = [0, 0], sizes = [1, 128], strides = [1, 1]} : vector<2x128xf32> to vector<1x128xf32>
    %9 = vector.broadcast %7 : vector<8x1xf32> to vector<8x128xf32>
    %10 = vector.broadcast %8 : vector<1x128xf32> to vector<8x128xf32>
    %11 = arith.mulf %9, %10 : vector<8x128xf32>
    %12 = vector.extract_strided_slice %6 {offsets = [0, 1], sizes = [8, 1], strides = [1, 1]} : vector<8x2xf32> to vector<8x1xf32>
    %13 = vector.extract_strided_slice %0 {offsets = [1, 0], sizes = [1, 128], strides = [1, 1]} : vector<2x128xf32> to vector<1x128xf32>
    %14 = vector.broadcast %12 : vector<8x1xf32> to vector<8x128xf32>
    %15 = vector.broadcast %13 : vector<1x128xf32> to vector<8x128xf32>
    %16 = arith.mulf %14, %15 : vector<8x128xf32>
    %17 = arith.addf %11, %16 : vector<8x128xf32>
    %18 = vector.broadcast %1 : vector<1x128xf32> to vector<8x128xf32>
    %19 = arith.addf %17, %18 : vector<8x128xf32>
    %cst = arith.constant 5.000000e-01 : f32
    %20 = vector.broadcast %cst : f32 to vector<8x128xf32>
    %21 = arith.mulf %20, %19 : vector<8x128xf32>
    %22 = math.tanh %21 : vector<8x128xf32>
    %cst_13 = arith.constant 5.000000e-01 : f32
    %23 = vector.broadcast %cst_13 : f32 to vector<8x128xf32>
    %24 = arith.mulf %23, %22 : vector<8x128xf32>
    %cst_14 = arith.constant 5.000000e-01 : f32
    %25 = vector.broadcast %cst_14 : f32 to vector<8x128xf32>
    %26 = arith.addf %24, %25 : vector<8x128xf32>
    %27 = arith.truncf %26 : vector<8x128xf32> to vector<8x128xbf16>
    %cst_15 = arith.constant dense<0.000000e+00> : vector<8x128xf32>
    %28 = tpu.matmul %27, %2, %cst_15 {dimension_numbers = #tpu.dot_dimension_numbers<[1], [0], [0], [1], [0, 0, 1, 1], [], []>} : vector<8x128xbf16>, vector<128x128xbf16>, vector<8x128xf32> -> vector<8x128xf32>
    %29 = vector.broadcast %3 : vector<1x128xf32> to vector<8x128xf32>
    %30 = arith.addf %28, %29 : vector<8x128xf32>
    %cst_16 = arith.constant 5.000000e-01 : f32
    %31 = vector.broadcast %cst_16 : f32 to vector<8x128xf32>
    %32 = arith.mulf %31, %30 : vector<8x128xf32>
    %33 = math.tanh %32 : vector<8x128xf32>
    %cst_17 = arith.constant 5.000000e-01 : f32
    %34 = vector.broadcast %cst_17 : f32 to vector<8x128xf32>
    %35 = arith.mulf %34, %33 : vector<8x128xf32>
    %cst_18 = arith.constant 5.000000e-01 : f32
    %36 = vector.broadcast %cst_18 : f32 to vector<8x128xf32>
    %37 = arith.addf %35, %36 : vector<8x128xf32>
    %38 = arith.truncf %37 : vector<8x128xf32> to vector<8x128xbf16>
    %cst_19 = arith.constant dense<0.000000e+00> : vector<8x128xf32>
    %39 = tpu.matmul %38, %2, %cst_19 {dimension_numbers = #tpu.dot_dimension_numbers<[1], [0], [0], [1], [0, 0, 1, 1], [], []>} : vector<8x128xbf16>, vector<128x128xbf16>, vector<8x128xf32> -> vector<8x128xf32>
    %40 = vector.broadcast %3 : vector<1x128xf32> to vector<8x128xf32>
    %41 = arith.addf %39, %40 : vector<8x128xf32>
    %cst_20 = arith.constant 5.000000e-01 : f32
    %42 = vector.broadcast %cst_20 : f32 to vector<8x128xf32>
    %43 = arith.mulf %42, %41 : vector<8x128xf32>
    %44 = math.tanh %43 : vector<8x128xf32>
    %cst_21 = arith.constant 5.000000e-01 : f32
    %45 = vector.broadcast %cst_21 : f32 to vector<8x128xf32>
    %46 = arith.mulf %45, %44 : vector<8x128xf32>
    %cst_22 = arith.constant 5.000000e-01 : f32
    %47 = vector.broadcast %cst_22 : f32 to vector<8x128xf32>
    %48 = arith.addf %46, %47 : vector<8x128xf32>
    %49 = arith.truncf %48 : vector<8x128xf32> to vector<8x128xbf16>
    %cst_23 = arith.constant dense<0.000000e+00> : vector<8x128xf32>
    %50 = tpu.matmul %49, %4, %cst_23 {dimension_numbers = #tpu.dot_dimension_numbers<[1], [0], [0], [1], [0, 0, 1, 1], [], []>} : vector<8x128xbf16>, vector<128x128xbf16>, vector<8x128xf32> -> vector<8x128xf32>
    %51 = vector.broadcast %5 : vector<1x128xf32> to vector<8x128xf32>
    %52 = arith.addf %50, %51 : vector<8x128xf32>
    %cst_24 = arith.constant 5.000000e-01 : f32
    %53 = vector.broadcast %cst_24 : f32 to vector<8x128xf32>
    %54 = arith.mulf %53, %52 : vector<8x128xf32>
    %55 = math.tanh %54 : vector<8x128xf32>
    %cst_25 = arith.constant 5.000000e-01 : f32
    %56 = vector.broadcast %cst_25 : f32 to vector<8x128xf32>
    %57 = arith.mulf %56, %55 : vector<8x128xf32>
    %cst_26 = arith.constant 5.000000e-01 : f32
    %58 = vector.broadcast %cst_26 : f32 to vector<8x128xf32>
    %59 = arith.addf %57, %58 : vector<8x128xf32>
    %60 = arith.truncf %59 : vector<8x128xf32> to vector<8x128xbf16>
    %c0_27 = arith.constant 0 : index
    %c0_28 = arith.constant 0 : index
    %61 = vector.load %arg8[%c0_27, %c0_28] : memref<8x128xbf16, #tpu.memory_space<vmem>>, vector<8x128xbf16>
    tpu.vector_store %arg8[%c0_27, %c0_28], %60 {strides = array<i32>} : memref<8x128xbf16, #tpu.memory_space<vmem>>, vector<8x128xbf16>,
    return
  }
  func.func @transform_0(%arg0: i32) -> (i32, i32) {
    %c0_i32 = arith.constant 0 : i32
    %c0_i32_0 = arith.constant 0 : i32
    return %arg0, %c0_i32 : i32, i32
  }
  func.func @transform_1(%arg0: i32) -> (i32, i32) {
    %c0_i32 = arith.constant 0 : i32
    %c0_i32_0 = arith.constant 0 : i32
    %c0_i32_1 = arith.constant 0 : i32
    return %c0_i32, %c0_i32_0 : i32, i32
  }
  func.func @transform_2(%arg0: i32) -> (i32, i32) {
    %c0_i32 = arith.constant 0 : i32
    %c0_i32_0 = arith.constant 0 : i32
    %c0_i32_1 = arith.constant 0 : i32
    return %c0_i32, %c0_i32_0 : i32, i32
  }
  func.func @transform_3(%arg0: i32) -> (i32, i32) {
    %c0_i32 = arith.constant 0 : i32
    %c0_i32_0 = arith.constant 0 : i32
    %c0_i32_1 = arith.constant 0 : i32
    return %c0_i32, %c0_i32_0 : i32, i32
  }
  func.func @transform_4(%arg0: i32) -> (i32, i32) {
    %c0_i32 = arith.constant 0 : i32
    %c0_i32_0 = arith.constant 0 : i32
    %c0_i32_1 = arith.constant 0 : i32
    return %c0_i32, %c0_i32_0 : i32, i32
  }
  func.func @transform_5(%arg0: i32) -> (i32, i32) {
    %c0_i32 = arith.constant 0 : i32
    %c0_i32_0 = arith.constant 0 : i32
    %c0_i32_1 = arith.constant 0 : i32
    return %c0_i32, %c0_i32_0 : i32, i32
  }
  func.func @transform_6(%arg0: i32) -> (i32, i32) {
    %c0_i32 = arith.constant 0 : i32
    %c0_i32_0 = arith.constant 0 : i32
    %c0_i32_1 = arith.constant 0 : i32
    return %c0_i32, %c0_i32_0 : i32, i32
  }
  func.func @transform_7(%arg0: i32) -> (i32, i32) {
    %c0_i32 = arith.constant 0 : i32
    %c0_i32_0 = arith.constant 0 : i32
    return %arg0, %c0_i32 : i32, i32
  }
}

</mosaic_0001>

<llo_original>
// kernel: tpu_custom_call.1
$region0: #{tpu_custom_call.1}
  #allocation0 [shape = 'u32[]', space=smem, size = 0x4, offset = 0x4, fixed_abs, tag = 'smem constant byte address 0x4 - core index']
  #allocation1 [shape = 'u32[144,128]{1,0:T(1,128)}', space=vmem, size = 0x12000, scoped, tag = 'internal scratch']
  %s0 = inlined_call_operand.vmem [shape: f32[8,2], index: 0, kind: input, shape index: {}]
  %s1 = inlined_call_operand.vmem [shape: f32[2,128], index: 1, kind: input, shape index: {}]
  %s2 = inlined_call_operand.vmem [shape: f32[1,128], index: 2, kind: input, shape index: {}]
  %s3 = inlined_call_operand.hbm [shape: bf16[128,128], index: 3, kind: input, shape index: {}]
  %s4 = inlined_call_operand.vmem [shape: f32[1,128], index: 4, kind: input, shape index: {}]
  %s5 = inlined_call_operand.hbm [shape: bf16[128,128], index: 5, kind: input, shape index: {}]
  %s6 = inlined_call_operand.vmem [shape: f32[1,128], index: 6, kind: input, shape index: {}]
  %s7 = inlined_call_operand.hbm [shape: bf16[8,128], index: 7, kind: output, shape index: {}]
  %s8 = sld [smem:[#allocation0]]
  $region46: #{tpu_custom_call.1} parent=0
    _
  %s10 = ssub.s32 1, %s8
  %s11 = scalar_select 0, %s10, %s8
  $region1: #{tpu_custom_call.1} parent=0
    #allocation2 [shape = 'u8[32768]{0}', space=vmem, size = 0x8000, scoped, tag = 'input window, operand 3, single buffered']
    #allocation3 [shape = 's32[1]{0}', space=sflag, size = 0x4, scoped, tag = 'scoped memory for tpu_custom_call.1']
    #allocation4 [shape = 's32[1]{0}', space=sflag, size = 0x4, scoped, tag = 'scoped memory for tpu_custom_call.1']
    #allocation5 [shape = 'u8[32768]{0}', space=vmem, size = 0x8000, scoped, tag = 'input window, operand 5, single buffered']
    #allocation6 [shape = 's32[1]{0}', space=sflag, size = 0x4, scoped, tag = 'scoped memory for tpu_custom_call.1']
    #allocation7 [shape = 'u8[2048]{0}', space=vmem, size = 0x800, scoped, tag = 'output window, operand 0, single buffered']
    %12 = vsyncpa [#allocation3], 0
    %13 = vsyncpa [#allocation6], 0
    %14 = vsyncpa [#allocation4], 0
    // Predicated region
    $region2: #{tpu_custom_call.1} parent=1 // pred_check
      _
    $region3: #{tpu_custom_call.1} parent=1 // pred_check_branch
      %16 = sbr.rel (0) target = $region5
    $region4: #{tpu_custom_call.1} parent=1 // pred_region
      _
    $region5: #{tpu_custom_call.1} parent=1 // pred_fallthru
      _
    // Predicated region
    $region6: #{tpu_custom_call.1} parent=1 // pred_check
      _
    $region7: #{tpu_custom_call.1} parent=1 // pred_check_branch
      %18 = sbr.rel (0) target = $region9
    $region8: #{tpu_custom_call.1} parent=1 // pred_region
      _
    $region9: #{tpu_custom_call.1} parent=1 // pred_fallthru
      _
    // Predicated region
    $region10: #{tpu_custom_call.1} parent=1 // pred_check
      _
    $region11: #{tpu_custom_call.1} parent=1 // pred_check_branch
      %20 = sbr.rel (0) target = $region13
    $region12: #{tpu_custom_call.1} parent=1 // pred_region
      _
    $region13: #{tpu_custom_call.1} parent=1 // pred_fallthru
      _
    // Predicated region
    $region14: #{tpu_custom_call.1} parent=1 // pred_check
      _
    $region15: #{tpu_custom_call.1} parent=1 // pred_check_branch
      %22 = sbr.rel (0) target = $region17
    $region16: #{tpu_custom_call.1} parent=1 // pred_region
      %s24 = ssub.s32 1024, 1024
      %25 = vsyncadd [#allocation3], %s24
      %s26 = sshll.u32 [#allocation2], 4
      %s27 = int_to_ptr.vmem [resolvable:$true] %s26
      %32 = dma.hbm_to_vmem [thread:$0]  %s3, 1024, %s27, [#allocation3], 64, 64, 4
    $region17: #{tpu_custom_call.1} parent=1 // pred_fallthru
      _
    // Predicated region
    $region18: #{tpu_custom_call.1} parent=1 // pred_check
      _
    $region19: #{tpu_custom_call.1} parent=1 // pred_check_branch
      %34 = sbr.rel (0) target = $region21
    $region20: #{tpu_custom_call.1} parent=1 // pred_region
      _
    $region21: #{tpu_custom_call.1} parent=1 // pred_fallthru
      _
    // Predicated region
    $region22: #{tpu_custom_call.1} parent=1 // pred_check
      _
    $region23: #{tpu_custom_call.1} parent=1 // pred_check_branch
      %36 = sbr.rel (0) target = $region25
    $region24: #{tpu_custom_call.1} parent=1 // pred_region
      %s38 = ssub.s32 1024, 1024
      %39 = vsyncadd [#allocation6], %s38
      %s40 = sshll.u32 [#allocation5], 4
      %s41 = int_to_ptr.vmem [resolvable:$true] %s40
      %46 = dma.hbm_to_vmem [thread:$0]  %s5, 1024, %s41, [#allocation6], 64, 64, 4
    $region25: #{tpu_custom_call.1} parent=1 // pred_fallthru
      _
    // Predicated region
    $region26: #{tpu_custom_call.1} parent=1 // pred_check
      _
    $region27: #{tpu_custom_call.1} parent=1 // pred_check_branch
      %48 = sbr.rel (0) target = $region29
    $region28: #{tpu_custom_call.1} parent=1 // pred_region
      _
    $region29: #{tpu_custom_call.1} parent=1 // pred_fallthru
      _
    // Predicated region
    $region30: #{tpu_custom_call.1} parent=1 // pred_check
      _
    $region31: #{tpu_custom_call.1} parent=1 // pred_check_branch
      %50 = sbr.rel (0) target = $region33
    $region32: #{tpu_custom_call.1} parent=1 // pred_region
      %51 = dma.done [#allocation3], 1024
    $region33: #{tpu_custom_call.1} parent=1 // pred_fallthru
      _
    // Predicated region
    $region34: #{tpu_custom_call.1} parent=1 // pred_check
      _
    $region35: #{tpu_custom_call.1} parent=1 // pred_check_branch
      %53 = sbr.rel (0) target = $region37
    $region36: #{tpu_custom_call.1} parent=1 // pred_region
      %54 = dma.done [#allocation6], 1024
    $region37: #{tpu_custom_call.1} parent=1 // pred_fallthru
      _
    %v56 = vld [vmem:[%s1] sm:$0x3]
    %v57 = vld [vmem:[%s2] sm:$0x1]
    %v58 = vld [vmem:[#allocation2] sm:$0xf]
    %v59 = vld [vmem:[#allocation2 + $0x4] sm:$0xf]
    %v60 = vld [vmem:[#allocation2 + $0x8] sm:$0xf]
    %v61 = vld [vmem:[#allocation2 + $0xc] sm:$0xf]
    %v62 = vld [vmem:[#allocation2 + $0x10] sm:$0xf]
    %v63 = vld [vmem:[#allocation2 + $0x14] sm:$0xf]
    %v64 = vld [vmem:[#allocation2 + $0x18] sm:$0xf]
    %v65 = vld [vmem:[#allocation2 + $0x1c] sm:$0xf]
    %v66 = vld [vmem:[#allocation2 + $0x20] sm:$0xf]
    %v67 = vld [vmem:[#allocation2 + $0x24] sm:$0xf]
    %v68 = vld [vmem:[#allocation2 + $0x28] sm:$0xf]
    %v69 = vld [vmem:[#allocation2 + $0x2c] sm:$0xf]
    %v70 = vld [vmem:[#allocation2 + $0x30] sm:$0xf]
    %v71 = vld [vmem:[#allocation2 + $0x34] sm:$0xf]
    %v72 = vld [vmem:[#allocation2 + $0x38] sm:$0xf]
    %v73 = vld [vmem:[#allocation2 + $0x3c] sm:$0xf]
    %v74 = vld [vmem:[%s4] sm:$0x1]
    %v75 = vld [vmem:[#allocation5] sm:$0xf]
    %v76 = vld [vmem:[#allocation5 + $0x4] sm:$0xf]
    %v77 = vld [vmem:[#allocation5 + $0x8] sm:$0xf]
    %v78 = vld [vmem:[#allocation5 + $0xc] sm:$0xf]
    %v79 = vld [vmem:[#allocation5 + $0x10] sm:$0xf]
    %v80 = vld [vmem:[#allocation5 + $0x14] sm:$0xf]
    %v81 = vld [vmem:[#allocation5 + $0x18] sm:$0xf]
    %v82 = vld [vmem:[#allocation5 + $0x1c] sm:$0xf]
    %v83 = vld [vmem:[#allocation5 + $0x20] sm:$0xf]
    %v84 = vld [vmem:[#allocation5 + $0x24] sm:$0xf]
    %v85 = vld [vmem:[#allocation5 + $0x28] sm:$0xf]
    %v86 = vld [vmem:[#allocation5 + $0x2c] sm:$0xf]
    %v87 = vld [vmem:[#allocation5 + $0x30] sm:$0xf]
    %v88 = vld [vmem:[#allocation5 + $0x34] sm:$0xf]
    %v89 = vld [vmem:[#allocation5 + $0x38] sm:$0xf]
    %v90 = vld [vmem:[#allocation5 + $0x3c] sm:$0xf]
    %v91 = vld [vmem:[%s6] sm:$0x1]
    %v92 = vld [vmem:[%s0] sm:$0xff]
    %94 = vset.pattern.permute.xlu0 0
    %95 = vperm.xlu0 %94, %v92
    %v96 = vpop.permute.xlu0 %95
    %v98 = vlaneseq
    %v99 = vshrl.u32 %v98, 7
    %v100 = vsub.s32 0, %v99
    %v101 = vrot.slane %v56, %v100
    %v102 = vmul.f32 %v96, %v101
    %103 = vset.pattern.permute.xlu0 1
    %104 = vperm.xlu0 %103, %v92
    %v105 = vpop.permute.xlu0 %104
    %v107 = vlaneseq
    %v108 = vshrl.u32 %v107, 7
    %v109 = vsub.s32 1, %v108
    %v110 = vrot.slane %v56, %v109
    %v111 = vmul.f32 %v105, %v110
    %v112 = vadd.f32 %v102, %v111
    %v114 = vlaneseq
    %v115 = vshrl.u32 %v114, 7
    %v116 = vsub.s32 0, %v115
    %v117 = vrot.slane %v57, %v116
    %v119 = vadd.f32 %v112, %v117
    %v120 = vmul.f32 %v119, 0.5
    %v121 = vtanh.pop %v120
    %v122 = vmul.f32 %v121, 0.5
    %v123 = vadd.f32 %v122, 0.5
    %v124 = vpack.c.bf16 %v123, %v123
    %v126 = vlaneseq
    %v127 = vshrl.u32 %v126, 7
    %v128 = vsub.s32 0, %v127
    %v129 = vrot.slane %v74, %v128
    %v147 = vunpack.c.l.b16 %v58
    %v148 = vunpack.c.l.b16 %v59
    %v149 = vunpack.c.l.b16 %v60
    %v150 = vunpack.c.l.b16 %v61
    %v151 = vunpack.c.l.b16 %v62
    %v152 = vunpack.c.l.b16 %v63
    %v153 = vunpack.c.l.b16 %v64
    %v154 = vunpack.c.l.b16 %v65
    %v155 = vunpack.c.l.b16 %v66
    %v156 = vunpack.c.l.b16 %v67
    %v157 = vunpack.c.l.b16 %v68
    %v158 = vunpack.c.l.b16 %v69
    %v159 = vunpack.c.l.b16 %v70
    %v160 = vunpack.c.l.b16 %v71
    %v161 = vunpack.c.l.b16 %v72
    %v162 = vunpack.c.l.b16 %v73
    %v163 = vpack.c.b16 %v148, %v147
    %v164 = vpack.c.b16 %v150, %v149
    %v165 = vpack.c.b16 %v152, %v151
    %v166 = vpack.c.b16 %v154, %v153
    %v167 = vpack.c.b16 %v156, %v155
    %v168 = vpack.c.b16 %v158, %v157
    %v169 = vpack.c.b16 %v160, %v159
    %v170 = vpack.c.b16 %v162, %v161
    %179 = vmatprep.subr.bf16.mxu0 0
    %180 = vmatpush1.bf16.msra.mxu0 %v163
    %181 = vmatprep.subr.bf16.mxu0 0
    %182 = vmatpush1.bf16.msra.mxu0 %v164
    %183 = vmatprep.subr.bf16.mxu0 0
    %184 = vmatpush1.bf16.msra.mxu0 %v165
    %185 = vmatprep.subr.bf16.mxu0 0
    %186 = vmatpush1.bf16.msra.mxu0 %v166
    %187 = vmatprep.subr.bf16.mxu0 0
    %188 = vmatpush1.bf16.msra.mxu0 %v167
    %189 = vmatprep.subr.bf16.mxu0 0
    %190 = vmatpush1.bf16.msra.mxu0 %v168
    %191 = vmatprep.subr.bf16.mxu0 0
    %192 = vmatpush1.bf16.msra.mxu0 %v169
    %193 = vmatprep.subr.bf16.mxu0 0
    %194 = vmatpush1.bf16.msra.mxu0 %v170
    %195 = vmatprep.subr.bf16.mxu0 0
    %196 = vmatpush1.bf16.msra.mxu0 0
    %197 = vmatprep.subr.bf16.mxu0 0
    %198 = vmatpush1.bf16.msra.mxu0 0
    %199 = vmatprep.subr.bf16.mxu0 0
    %200 = vmatpush1.bf16.msra.mxu0 0
    %201 = vmatprep.subr.bf16.mxu0 0
    %202 = vmatpush1.bf16.msra.mxu0 0
    %203 = vmatprep.subr.bf16.mxu0 0
    %204 = vmatpush1.bf16.msra.mxu0 0
    %205 = vmatprep.subr.bf16.mxu0 0
    %206 = vmatpush1.bf16.msra.mxu0 0
    %207 = vmatprep.subr.bf16.mxu0 0
    %208 = vmatpush1.bf16.msra.mxu0 0
    %209 = vmatprep.subr.bf16.mxu0 0
    %210 = vmatpush1.bf16.msra.mxu0 0
    %211 = vmatprep.mubr.bf16.mxu0 0
    %212 = vmatmul.mubr.bf16.gmra.mrb[0].mxu0 %v124
    %v213 = vpop.f32.mrb[0].mxu0
    %v214 = vadd.f32 %v129, %v213
    %v215 = vpop.f32.mrb[0].mxu0
    %v216 = vpop.f32.mrb[0].mxu0
    %v217 = vpop.f32.mrb[0].mxu0
    %218 = vdwg.mxu0
    %v219 = vmul.f32 %v214, 0.5
    %v220 = vtanh.pop %v219
    %v221 = vmul.f32 %v220, 0.5
    %v222 = vadd.f32 %v221, 0.5
    %v223 = vpack.c.bf16 %v222, %v222
    %224 = vmatprep.subr.bf16.mxu0 0
    %225 = vmatpush1.bf16.msra.mxu0 %v163
    %226 = vmatprep.subr.bf16.mxu0 0
    %227 = vmatpush1.bf16.msra.mxu0 %v164
    %228 = vmatprep.subr.bf16.mxu0 0
    %229 = vmatpush1.bf16.msra.mxu0 %v165
    %230 = vmatprep.subr.bf16.mxu0 0
    %231 = vmatpush1.bf16.msra.mxu0 %v166
    %232 = vmatprep.subr.bf16.mxu0 0
    %233 = vmatpush1.bf16.msra.mxu0 %v167
    %234 = vmatprep.subr.bf16.mxu0 0
    %235 = vmatpush1.bf16.msra.mxu0 %v168
    %236 = vmatprep.subr.bf16.mxu0 0
    %237 = vmatpush1.bf16.msra.mxu0 %v169
    %238 = vmatprep.subr.bf16.mxu0 0
    %239 = vmatpush1.bf16.msra.mxu0 %v170
    %240 = vmatprep.subr.bf16.mxu0 0
    %241 = vmatpush1.bf16.msra.mxu0 0
    %242 = vmatprep.subr.bf16.mxu0 0
    %243 = vmatpush1.bf16.msra.mxu0 0
    %244 = vmatprep.subr.bf16.mxu0 0
    %245 = vmatpush1.bf16.msra.mxu0 0
    %246 = vmatprep.subr.bf16.mxu0 0
    %247 = vmatpush1.bf16.msra.mxu0 0
    %248 = vmatprep.subr.bf16.mxu0 0
    %249 = vmatpush1.bf16.msra.mxu0 0
    %250 = vmatprep.subr.bf16.mxu0 0
    %251 = vmatpush1.bf16.msra.mxu0 0
    %252 = vmatprep.subr.bf16.mxu0 0
    %253 = vmatpush1.bf16.msra.mxu0 0
    %254 = vmatprep.subr.bf16.mxu0 0
    %255 = vmatpush1.bf16.msra.mxu0 0
    %256 = vmatprep.mubr.bf16.mxu0 0
    %257 = vmatmul.mubr.bf16.gmra.mrb[0].mxu0 %v223
    %v258 = vpop.f32.mrb[0].mxu0
    %v259 = vadd.f32 %v129, %v258
    %v260 = vpop.f32.mrb[0].mxu0
    %v261 = vpop.f32.mrb[0].mxu0
    %v262 = vpop.f32.mrb[0].mxu0
    %263 = vdwg.mxu0
    %v264 = vmul.f32 %v259, 0.5
    %v265 = vtanh.pop %v264
    %v266 = vmul.f32 %v265, 0.5
    %v267 = vadd.f32 %v266, 0.5
    %v268 = vpack.c.bf16 %v267, %v267
    %v270 = vlaneseq
    %v271 = vshrl.u32 %v270, 7
    %v272 = vsub.s32 0, %v271
    %v273 = vrot.slane %v91, %v272
    %v291 = vunpack.c.l.b16 %v75
    %v292 = vunpack.c.l.b16 %v76
    %v293 = vunpack.c.l.b16 %v77
    %v294 = vunpack.c.l.b16 %v78
    %v295 = vunpack.c.l.b16 %v79
    %v296 = vunpack.c.l.b16 %v80
    %v297 = vunpack.c.l.b16 %v81
    %v298 = vunpack.c.l.b16 %v82
    %v299 = vunpack.c.l.b16 %v83
    %v300 = vunpack.c.l.b16 %v84
    %v301 = vunpack.c.l.b16 %v85
    %v302 = vunpack.c.l.b16 %v86
    %v303 = vunpack.c.l.b16 %v87
    %v304 = vunpack.c.l.b16 %v88
    %v305 = vunpack.c.l.b16 %v89
    %v306 = vunpack.c.l.b16 %v90
    %v307 = vpack.c.b16 %v292, %v291
    %v308 = vpack.c.b16 %v294, %v293
    %v309 = vpack.c.b16 %v296, %v295
    %v310 = vpack.c.b16 %v298, %v297
    %v311 = vpack.c.b16 %v300, %v299
    %v312 = vpack.c.b16 %v302, %v301
    %v313 = vpack.c.b16 %v304, %v303
    %v314 = vpack.c.b16 %v306, %v305
    %323 = vmatprep.subr.bf16.mxu0 0
    %324 = vmatpush1.bf16.msra.mxu0 %v307
    %325 = vmatprep.subr.bf16.mxu0 0
    %326 = vmatpush1.bf16.msra.mxu0 %v308
    %327 = vmatprep.subr.bf16.mxu0 0
    %328 = vmatpush1.bf16.msra.mxu0 %v309
    %329 = vmatprep.subr.bf16.mxu0 0
    %330 = vmatpush1.bf16.msra.mxu0 %v310
    %331 = vmatprep.subr.bf16.mxu0 0
    %332 = vmatpush1.bf16.msra.mxu0 %v311
    %333 = vmatprep.subr.bf16.mxu0 0
    %334 = vmatpush1.bf16.msra.mxu0 %v312
    %335 = vmatprep.subr.bf16.mxu0 0
    %336 = vmatpush1.bf16.msra.mxu0 %v313
    %337 = vmatprep.subr.bf16.mxu0 0
    %338 = vmatpush1.bf16.msra.mxu0 %v314
    %339 = vmatprep.subr.bf16.mxu0 0
    %340 = vmatpush1.bf16.msra.mxu0 0
    %341 = vmatprep.subr.bf16.mxu0 0
    %342 = vmatpush1.bf16.msra.mxu0 0
    %343 = vmatprep.subr.bf16.mxu0 0
    %344 = vmatpush1.bf16.msra.mxu0 0
    %345 = vmatprep.subr.bf16.mxu0 0
    %346 = vmatpush1.bf16.msra.mxu0 0
    %347 = vmatprep.subr.bf16.mxu0 0
    %348 = vmatpush1.bf16.msra.mxu0 0
    %349 = vmatprep.subr.bf16.mxu0 0
    %350 = vmatpush1.bf16.msra.mxu0 0
    %351 = vmatprep.subr.bf16.mxu0 0
    %352 = vmatpush1.bf16.msra.mxu0 0
    %353 = vmatprep.subr.bf16.mxu0 0
    %354 = vmatpush1.bf16.msra.mxu0 0
    %355 = vmatprep.mubr.bf16.mxu0 0
    %356 = vmatmul.mubr.bf16.gmra.mrb[0].mxu0 %v268
    %v357 = vpop.f32.mrb[0].mxu0
    %v358 = vadd.f32 %v273, %v357
    %v359 = vpop.f32.mrb[0].mxu0
    %v360 = vpop.f32.mrb[0].mxu0
    %v361 = vpop.f32.mrb[0].mxu0
    %362 = vdwg.mxu0
    %v363 = vmul.f32 %v358, 0.5
    %v364 = vtanh.pop %v363
    %v365 = vmul.f32 %v364, 0.5
    %v366 = vadd.f32 %v365, 0.5
    %v367 = vpack.c.bf16 %v366, %v366
    %368 = vst [vmem:[#allocation7] sm:$0xf] %v367
    // Predicated region
    $region38: #{tpu_custom_call.1} parent=1 // pred_check
      _
    $region39: #{tpu_custom_call.1} parent=1 // pred_check_branch
      %370 = sbr.rel (0) target = $region41
    $region40: #{tpu_custom_call.1} parent=1 // pred_region
      %s372 = ssub.s32 64, 64
      %373 = vsyncadd [#allocation4], %s372
      %s375 = sshll.u32 [#allocation7], 4
      %s376 = int_to_ptr.vmem [resolvable:$true] %s375
      %378 = dma.vmem_to_hbm [thread:$0]  %s376, 64, %s7, [#allocation4]
    $region41: #{tpu_custom_call.1} parent=1 // pred_fallthru
      _
    // Predicated region
    $region42: #{tpu_custom_call.1} parent=1 // pred_check
      _
    $region43: #{tpu_custom_call.1} parent=1 // pred_check_branch
      %380 = sbr.rel (0) target = $region45
    $region44: #{tpu_custom_call.1} parent=1 // pred_region
      %381 = dma.done [#allocation4], 64
    $region45: #{tpu_custom_call.1} parent=1 // pred_fallthru
      _
    %382 = vsyncpa [#allocation3], 1
    %383 = vsyncpa [#allocation6], 1
    %384 = vsyncpa [#allocation4], 1

</llo_original>
